<compile_context>
chip_gen: v5e
topology: v5e:2x2
jax: 0.10.0
libtpu: 0.0.40
codegen_flags: <defaults>
</compile_context>

<pallas_src>
import functools

import jax
import jax.numpy as jnp
from jax.experimental import pallas as pl
from jax.experimental.pallas import tpu as pltpu


EMBEDDING_DIM = 128
LANE = 128


def _round_up(x, m):
    return ((x + m - 1) // m) * m


def _mlp_actor_kernel(x_ref, w1_ref, b1_ref, w2_ref, b2_ref, w3_ref, b3_ref,
                      o_ref, *, compute_dtype):
    # MXU inputs optionally in bf16; accumulation / bias / ReLU stay in f32.
    x = x_ref[...].astype(compute_dtype)
    w1 = w1_ref[...].astype(compute_dtype)
    w2 = w2_ref[...].astype(compute_dtype)

    # Layer 1: Linear(F_pad -> E) + ReLU   (zero-padded F columns contribute 0)
    h = jnp.dot(x, w1, preferred_element_type=jnp.float32) + b1_ref[...]
    h = jnp.maximum(h, 0.0)

    # Layer 2: Linear(E -> E) + ReLU
    h = jnp.dot(h.astype(compute_dtype), w2,
                preferred_element_type=jnp.float32) + b2_ref[...]
    h = jnp.maximum(h, 0.0)

    # Layer 3: Linear(E -> 1) as VPU multiply + lane reduction (no N=1 MXU
    # matmul, no lane-width-1 store).  Pack the per-row logits lane-dense.
    col = jnp.sum(h * w3_ref[...], axis=-1, keepdims=True)        # (tile_m, 1)
    logits = col.reshape(o_ref.shape) + b3_ref[0]                 # (tile_m//128, 128)
    o_ref[...] = logits.astype(o_ref.dtype)


def _mlp_actor_pallas(x_pad, w1, b1, w2, b2, w3_row, b3, *, tile_m, use_bf16):
    m_pad, f_pad = x_pad.shape
    e = w1.shape[1]
    assert tile_m % LANE == 0 and m_pad % tile_m == 0

    rows_total = m_pad // LANE
    rows_per_tile = tile_m // LANE
    compute_dtype = jnp.bfloat16 if use_bf16 else jnp.float32
    full = lambda i: (0, 0)

    kernel = functools.partial(_mlp_actor_kernel, compute_dtype=compute_dtype)
    return pl.pallas_call(
        kernel,
        out_shape=jax.ShapeDtypeStruct((rows_total, LANE), jnp.float32),
        grid_spec=pltpu.PrefetchScalarGridSpec(
            num_scalar_prefetch=0,
            grid=(m_pad // tile_m,),
            in_specs=[
                pl.BlockSpec((tile_m, f_pad), lambda i: (i, 0)),    # x tile
                pl.BlockSpec((f_pad, e), full),                     # w1 (full)
                pl.BlockSpec((1, e), full),                         # b1
                pl.BlockSpec((e, e), full),                         # w2
                pl.BlockSpec((1, e), full),                         # b2
                pl.BlockSpec((1, e), full),                         # w3 as row
                pl.BlockSpec(memory_space=pltpu.MemorySpace.SMEM),  # b3 scalar
            ],
            out_specs=pl.BlockSpec((rows_per_tile, LANE), lambda i: (i, 0)),
        ),
        compiler_params=pltpu.CompilerParams(
            dimension_semantics=("parallel",)),
    )(x_pad, w1, b1, w2, b2, w3_row, b3)


def actor_forward(obs, params, *, tile_m=512, use_bf16=False):
    """Pallas equivalent of Actor.forward: returns (B, N) action logits."""
    x = obs["p_net_x"].astype(jnp.float32)            # (B, N, F)
    B, N, F = x.shape
    E = params["w1"].shape[1]
    assert E % LANE == 0
    assert tile_m % LANE == 0

    M = B * N
    f_pad = _round_up(F, LANE)        # full-lane x loads
    m128 = _round_up(M, LANE)
    tm = min(tile_m, m128)            # tiny inputs -> single grid step
    m_pad = _round_up(M, tm)

    x_flat = x.reshape(M, F)
    x_pad = jnp.zeros((m_pad, f_pad), jnp.float32).at[:M, :F].set(x_flat)

    w1 = params["w1"]
    if f_pad != F:
        w1 = jnp.zeros((f_pad, E), w1.dtype).at[:F, :].set(w1)

    w3_row = params["w3"].reshape(1, E)   # (E, 1) -> (1, E) row for VPU reduce
    b3 = params["b3"].reshape(1)          # scalar, lives in SMEM

    out = _mlp_actor_pallas(x_pad, w1, params["b1"], params["w2"],
                            params["b2"], w3_row, b3,
                            tile_m=tm, use_bf16=use_bf16)
    # out is (m_pad // 128, 128), lane-dense, rows packed row-major.
    return out.reshape(m_pad)[:M].reshape(B, N)


def init_actor_params(key, feature_dim, embedding_dim=EMBEDDING_DIM):
    """Init mimicking torch.nn.Linear default U[-1/sqrt(fan_in), 1/sqrt(fan_in)]."""
    ks = jax.random.split(key, 6)

    def lin(kw, kb, fan_in, fan_out):
        bound = 1.0 / jnp.sqrt(jnp.float32(fan_in))
        w = jax.random.uniform(kw, (fan_in, fan_out), jnp.float32,
                               minval=-bound, maxval=bound)
        b = jax.random.uniform(kb, (1, fan_out), jnp.float32,
                               minval=-bound, maxval=bound)
        return w, b

    w1, b1 = lin(ks[0], ks[1], feature_dim, embedding_dim)
    w2, b2 = lin(ks[2], ks[3], embedding_dim, embedding_dim)
    w3, b3 = lin(ks[4], ks[5], embedding_dim, 1)
    return {"w1": w1, "b1": b1, "w2": w2, "b2": b2, "w3": w3, "b3": b3}


def actor_forward_ref(obs, params):
    """Pure-JAX reference for correctness checking."""
    x = obs["p_net_x"].astype(jnp.float32)
    h = jnp.maximum(x @ params["w1"] + params["b1"], 0.0)
    h = jnp.maximum(h @ params["w2"] + params["b2"], 0.0)
    o = h @ params["w3"] + params["b3"]
    return o[..., 0]


if __name__ == "__main__":
    key = jax.random.PRNGKey(0)
    k_param, k_obs, k_obs2 = jax.random.split(key, 3)

    # Small shapes consistent with the module: batch=2, num_nodes=8, feat=32.
    B, N, F = 2, 8, 32
    params = init_actor_params(k_param, F)
    obs = {"p_net_x": jax.random.normal(k_obs, (B, N, F), jnp.float32)}

    ref = actor_forward_ref(obs, params)
    logits = jax.block_until_ready(actor_forward(obs, params))
    assert logits.shape == (B, N)
    assert jnp.allclose(logits, ref, atol=1e-4, rtol=1e-4)

    # bf16 MXU-input path (recommended on v6e / v7x).
    logits_bf16 = jax.block_until_ready(actor_forward(obs, params, use_bf16=True))
    assert jnp.allclose(logits_bf16, ref, atol=5e-2, rtol=5e-2)

    # Larger case exercising the multi-step grid (M = 2048, tile_m = 512).
    B2, N2 = 4, 512
    obs2 = {"p_net_x": jax.random.normal(k_obs2, (B2, N2, F), jnp.float32)}
    ref2 = actor_forward_ref(obs2, params)
    logits2 = jax.block_until_ready(actor_forward(obs2, params))
    assert logits2.shape == (B2, N2)
    assert jnp.allclose(logits2, ref2, atol=1e-3, rtol=1e-3)

    print("KERNEL_OK")
</pallas_src>

<mosaic_0001>
module attributes {stable_mosaic.version = 11 : i64} {
  func.func @_mlp_actor_kernel(%arg0: i32, %arg1: memref<128x128xf32, #tpu.memory_space<vmem>>, %arg2: memref<128x128xf32, #tpu.memory_space<vmem>>, %arg3: memref<1x128xf32, #tpu.memory_space<vmem>>, %arg4: memref<128x128xf32, #tpu.memory_space<vmem>>, %arg5: memref<1x128xf32, #tpu.memory_space<vmem>>, %arg6: memref<1x128xf32, #tpu.memory_space<vmem>>, %arg7: memref<1xf32, #tpu.memory_space<smem>>, %arg8: memref<1x128xf32, #tpu.memory_space<vmem>>) attributes {dimension_semantics = [#tpu.dimension_semantics<parallel>], iteration_bounds = array<i64: 1>, scalar_prefetch = 0 : i64, scratch_operands = 0 : i64, tpu.core_type = #tpu.core_type<tc>, window_params = [{transform_indices = @transform_0, window_bounds = array<i64: 128, 128>}, {pipeline_mode = #tpu.pipeline_mode<synchronous>, transform_indices = @transform_1, window_bounds = array<i64: 128, 128>}, {pipeline_mode = #tpu.pipeline_mode<synchronous>, transform_indices = @transform_2, window_bounds = array<i64: 1, 128>}, {pipeline_mode = #tpu.pipeline_mode<synchronous>, transform_indices = @transform_3, window_bounds = array<i64: 128, 128>}, {pipeline_mode = #tpu.pipeline_mode<synchronous>, transform_indices = @transform_4, window_bounds = array<i64: 1, 128>}, {pipeline_mode = #tpu.pipeline_mode<synchronous>, transform_indices = @transform_5, window_bounds = array<i64: 1, 128>}, {transform_indices = @transform_6, window_bounds = array<i64: 1>}, {transform_indices = @transform_7, window_bounds = array<i64: 1, 128>}]} {
    %c0 = arith.constant 0 : index
    %c0_0 = arith.constant 0 : index
    %0 = vector.load %arg1[%c0, %c0_0] : memref<128x128xf32, #tpu.memory_space<vmem>>, vector<128x128xf32>
    %c0_1 = arith.constant 0 : index
    %c0_2 = arith.constant 0 : index
    %1 = vector.load %arg2[%c0_1, %c0_2] : memref<128x128xf32, #tpu.memory_space<vmem>>, vector<128x128xf32>
    %c0_3 = arith.constant 0 : index
    %c0_4 = arith.constant 0 : index
    %2 = vector.load %arg4[%c0_3, %c0_4] : memref<128x128xf32, #tpu.memory_space<vmem>>, vector<128x128xf32>
    %cst = arith.constant dense<0.000000e+00> : vector<128x128xf32>
    %3 = tpu.matmul %0, %1, %cst {dimension_numbers = #tpu.dot_dimension_numbers<[1], [0], [0], [1], [0, 0, 1, 1], [], []>} : vector<128x128xf32>, vector<128x128xf32>, vector<128x128xf32> -> vector<128x128xf32>
    %c0_5 = arith.constant 0 : index
    %c0_6 = arith.constant 0 : index
    %4 = vector.load %arg3[%c0_5, %c0_6] : memref<1x128xf32, #tpu.memory_space<vmem>>, vector<1x128xf32>
    %5 = vector.broadcast %4 : vector<1x128xf32> to vector<128x128xf32>
    %6 = arith.addf %3, %5 : vector<128x128xf32>
    %cst_7 = arith.constant 0.000000e+00 : f32
    %7 = vector.broadcast %cst_7 : f32 to vector<128x128xf32>
    %8 = arith.maximumf %6, %7 : vector<128x128xf32>
    %cst_8 = arith.constant dense<0.000000e+00> : vector<128x128xf32>
    %9 = tpu.matmul %8, %2, %cst_8 {dimension_numbers = #tpu.dot_dimension_numbers<[1], [0], [0], [1], [0, 0, 1, 1], [], []>} : vector<128x128xf32>, vector<128x128xf32>, vector<128x128xf32> -> vector<128x128xf32>
    %c0_9 = arith.constant 0 : index
    %c0_10 = arith.constant 0 : index
    %10 = vector.load %arg5[%c0_9, %c0_10] : memref<1x128xf32, #tpu.memory_space<vmem>>, vector<1x128xf32>
    %11 = vector.broadcast %10 : vector<1x128xf32> to vector<128x128xf32>
    %12 = arith.addf %9, %11 : vector<128x128xf32>
    %cst_11 = arith.constant 0.000000e+00 : f32
    %13 = vector.broadcast %cst_11 : f32 to vector<128x128xf32>
    %14 = arith.maximumf %12, %13 : vector<128x128xf32>
    %c0_12 = arith.constant 0 : index
    %c0_13 = arith.constant 0 : index
    %15 = vector.load %arg6[%c0_12, %c0_13] : memref<1x128xf32, #tpu.memory_space<vmem>>, vector<1x128xf32>
    %16 = vector.broadcast %15 : vector<1x128xf32> to vector<128x128xf32>
    %17 = arith.mulf %14, %16 : vector<128x128xf32>
    %cst_14 = arith.constant dense<0.000000e+00> : vector<128xf32>
    %18 = vector.multi_reduction <add>, %17, %cst_14 [1] : vector<128x128xf32> to vector<128xf32>
    %19 = vector.shape_cast %18 : vector<128xf32> to vector<128x1xf32>
    %20 = vector.shape_cast %19 : vector<128x1xf32> to vector<1x128xf32>
    %c0_15 = arith.constant 0 : index
    %21 = memref.load %arg7[%c0_15] : memref<1xf32, #tpu.memory_space<smem>>
    %22 = vector.broadcast %21 : f32 to vector<1x128xf32>
    %23 = arith.addf %20, %22 : vector<1x128xf32>
    %c0_16 = arith.constant 0 : index
    %c0_17 = arith.constant 0 : index
    %24 = vector.load %arg8[%c0_16, %c0_17] : memref<1x128xf32, #tpu.memory_space<vmem>>, vector<1x128xf32>
    tpu.vector_store %arg8[%c0_16, %c0_17], %23 {strides = array<i32>} : memref<1x128xf32, #tpu.memory_space<vmem>>, vector<1x128xf32>,
    return
  }
  func.func @transform_0(%arg0: i32) -> (i32, i32) {
    %c0_i32 = arith.constant 0 : i32
    %c0_i32_0 = arith.constant 0 : i32
    return %arg0, %c0_i32 : i32, i32
  }
  func.func @transform_1(%arg0: i32) -> (i32, i32) {
    %c0_i32 = arith.constant 0 : i32
    %c0_i32_0 = arith.constant 0 : i32
    %c0_i32_1 = arith.constant 0 : i32
    return %c0_i32, %c0_i32_0 : i32, i32
  }
  func.func @transform_2(%arg0: i32) -> (i32, i32) {
    %c0_i32 = arith.constant 0 : i32
    %c0_i32_0 = arith.constant 0 : i32
    %c0_i32_1 = arith.constant 0 : i32
    return %c0_i32, %c0_i32_0 : i32, i32
  }
  func.func @transform_3(%arg0: i32) -> (i32, i32) {
    %c0_i32 = arith.constant 0 : i32
    %c0_i32_0 = arith.constant 0 : i32
    %c0_i32_1 = arith.constant 0 : i32
    return %c0_i32, %c0_i32_0 : i32, i32
  }
  func.func @transform_4(%arg0: i32) -> (i32, i32) {
    %c0_i32 = arith.constant 0 : i32
    %c0_i32_0 = arith.constant 0 : i32
    %c0_i32_1 = arith.constant 0 : i32
    return %c0_i32, %c0_i32_0 : i32, i32
  }
  func.func @transform_5(%arg0: i32) -> (i32, i32) {
    %c0_i32 = arith.constant 0 : i32
    %c0_i32_0 = arith.constant 0 : i32
    %c0_i32_1 = arith.constant 0 : i32
    return %c0_i32, %c0_i32_0 : i32, i32
  }
  func.func @transform_6(%arg0: i32) -> i32 {
    %c0_i32 = arith.constant 0 : i32
    %c0_i32_0 = arith.constant 0 : i32
    return %c0_i32 : i32
  }
  func.func @transform_7(%arg0: i32) -> (i32, i32) {
    %c0_i32 = arith.constant 0 : i32
    %c0_i32_0 = arith.constant 0 : i32
    return %arg0, %c0_i32 : i32, i32
  }
}

</mosaic_0001>

<llo_original>
// kernel: tpu_custom_call.1
$region0: #{tpu_custom_call.1}
  #allocation0 [shape = 'u32[]', space=smem, size = 0x4, offset = 0x4, fixed_abs, tag = 'smem constant byte address 0x4 - core index']
  #allocation1 [shape = 'u32[72,128]{1,0:T(1,128)}', space=vmem, size = 0x9000, scoped, tag = 'internal scratch']
  #allocation2 [shape = 'f32[1]{0:T(128)S(6)}', space=smem, size = 0x200, scoped, tag = 'scoped memory for tpu_custom_call.1']
  %s0 = inlined_call_operand.hbm [shape: f32[128,128], index: 0, kind: input, shape index: {}]
  %s1 = inlined_call_operand.hbm [shape: f32[128,128], index: 1, kind: input, shape index: {}]
  %s2 = inlined_call_operand.vmem [shape: f32[1,128], index: 2, kind: input, shape index: {}]
  %s3 = inlined_call_operand.hbm [shape: f32[128,128], index: 3, kind: input, shape index: {}]
  %s4 = inlined_call_operand.vmem [shape: f32[1,128], index: 4, kind: input, shape index: {}]
  %s5 = inlined_call_operand.vmem [shape: f32[1,128], index: 5, kind: input, shape index: {}]
  %s6 = inlined_call_operand.<no memory space> [shape: f32[1], index: 6, kind: input, shape index: {}]
  %s7 = inlined_call_operand.hbm [shape: f32[1,128], index: 7, kind: output, shape index: {}]
  %s8 = sld [smem:[#allocation0]]
  $region50: #{tpu_custom_call.1} parent=0
    _
  %s10 = ssub.s32 1, %s8
  %s11 = scalar_select 0, %s10, %s8
  %12 = sst [smem:[#allocation2]] %s6
  $region1: #{tpu_custom_call.1} parent=0
    #allocation3 [shape = 'u8[65536]{0}', space=vmem, size = 0x10000, scoped, tag = 'input window, operand 0, single buffered']
    #allocation4 [shape = 's32[1]{0}', space=sflag, size = 0x4, scoped, tag = 'scoped memory for tpu_custom_call.1']
    #allocation5 [shape = 's32[1]{0}', space=sflag, size = 0x4, scoped, tag = 'scoped memory for tpu_custom_call.1']
    #allocation6 [shape = 'u8[65536]{0}', space=vmem, size = 0x10000, scoped, tag = 'input window, operand 1, single buffered']
    #allocation7 [shape = 's32[1]{0}', space=sflag, size = 0x4, scoped, tag = 'scoped memory for tpu_custom_call.1']
    #allocation8 [shape = 'u8[65536]{0}', space=vmem, size = 0x10000, scoped, tag = 'input window, operand 3, single buffered']
    #allocation9 [shape = 'u8[512]{0}', space=vmem, size = 0x400, scoped, tag = 'output window, operand 0, single buffered']
    %13 = vsyncpa [#allocation4], 0
    %14 = vsyncpa [#allocation7], 0
    %15 = vsyncpa [#allocation5], 0
    // Predicated region
    $region2: #{tpu_custom_call.1} parent=1 // pred_check
      _
    $region3: #{tpu_custom_call.1} parent=1 // pred_check_branch
      %17 = sbr.rel (0) target = $region5
    $region4: #{tpu_custom_call.1} parent=1 // pred_region
      %19 = vsyncadd [#allocation4], 0
      %s20 = sshll.u32 %s0, 4
      %s21 = int_to_ptr.hbm [resolvable:$true] %s20
      %s22 = sshll.u32 [#allocation3], 4
      %s23 = int_to_ptr.vmem [resolvable:$true] %s22
      %28 = dma.hbm_to_vmem [thread:$0]  %s21, 2048, %s23, [#allocation4], 128, 128, 8
    $region5: #{tpu_custom_call.1} parent=1 // pred_fallthru
      _
    // Predicated region
    $region6: #{tpu_custom_call.1} parent=1 // pred_check
      _
    $region7: #{tpu_custom_call.1} parent=1 // pred_check_branch
      %30 = sbr.rel (0) target = $region9
    $region8: #{tpu_custom_call.1} parent=1 // pred_region
      %32 = vsyncadd [#allocation7], 0
      %s33 = sshll.u32 %s1, 4
      %s34 = int_to_ptr.hbm [resolvable:$true] %s33
      %s35 = sshll.u32 [#allocation6], 4
      %s36 = int_to_ptr.vmem [resolvable:$true] %s35
      %41 = dma.hbm_to_vmem [thread:$0]  %s34, 2048, %s36, [#allocation7], 128, 128, 8
    $region9: #{tpu_custom_call.1} parent=1 // pred_fallthru
      _
    // Predicated region
    $region10: #{tpu_custom_call.1} parent=1 // pred_check
      _
    $region11: #{tpu_custom_call.1} parent=1 // pred_check_branch
      %43 = sbr.rel (0) target = $region13
    $region12: #{tpu_custom_call.1} parent=1 // pred_region
      _
    $region13: #{tpu_custom_call.1} parent=1 // pred_fallthru
      _
    // Predicated region
    $region14: #{tpu_custom_call.1} parent=1 // pred_check
      _
    $region15: #{tpu_custom_call.1} parent=1 // pred_check_branch
      %45 = sbr.rel (0) target = $region17
    $region16: #{tpu_custom_call.1} parent=1 // pred_region
      %47 = vsyncadd [#allocation7], 0
      %s48 = sshll.u32 %s3, 4
      %s49 = int_to_ptr.hbm [resolvable:$true] %s48
      %s50 = sshll.u32 [#allocation8], 4
      %s51 = int_to_ptr.vmem [resolvable:$true] %s50
      %56 = dma.hbm_to_vmem [thread:$0]  %s49, 2048, %s51, [#allocation7], 128, 128, 8
    $region17: #{tpu_custom_call.1} parent=1 // pred_fallthru
      _
    // Predicated region
    $region18: #{tpu_custom_call.1} parent=1 // pred_check
      _
    $region19: #{tpu_custom_call.1} parent=1 // pred_check_branch
      %58 = sbr.rel (0) target = $region21
    $region20: #{tpu_custom_call.1} parent=1 // pred_region
      _
    $region21: #{tpu_custom_call.1} parent=1 // pred_fallthru
      _
    // Predicated region
    $region22: #{tpu_custom_call.1} parent=1 // pred_check
      _
    $region23: #{tpu_custom_call.1} parent=1 // pred_check_branch
      %60 = sbr.rel (0) target = $region25
    $region24: #{tpu_custom_call.1} parent=1 // pred_region
      _
    $region25: #{tpu_custom_call.1} parent=1 // pred_fallthru
      _
    // Predicated region
    $region26: #{tpu_custom_call.1} parent=1 // pred_check
      _
    $region27: #{tpu_custom_call.1} parent=1 // pred_check_branch
      %62 = sbr.rel (0) target = $region29
    $region28: #{tpu_custom_call.1} parent=1 // pred_region
      _
    $region29: #{tpu_custom_call.1} parent=1 // pred_fallthru
      _
    // Predicated region
    $region30: #{tpu_custom_call.1} parent=1 // pred_check
      _
    $region31: #{tpu_custom_call.1} parent=1 // pred_check_branch
      %64 = sbr.rel (0) target = $region33
    $region32: #{tpu_custom_call.1} parent=1 // pred_region
      %66 = dma.done [#allocation4], 2048
    $region33: #{tpu_custom_call.1} parent=1 // pred_fallthru
      _
    // Predicated region
    $region34: #{tpu_custom_call.1} parent=1 // pred_check
      _
    $region35: #{tpu_custom_call.1} parent=1 // pred_check_branch
      %68 = sbr.rel (0) target = $region37
    $region36: #{tpu_custom_call.1} parent=1 // pred_region
      %70 = dma.done [#allocation7], 2048
    $region37: #{tpu_custom_call.1} parent=1 // pred_fallthru
      _
    // Predicated region
    $region38: #{tpu_custom_call.1} parent=1 // pred_check
      _
    $region39: #{tpu_custom_call.1} parent=1 // pred_check_branch
      %72 = sbr.rel (0) target = $region41
    $region40: #{tpu_custom_call.1} parent=1 // pred_region
      %74 = dma.done [#allocation7], 2048
    $region41: #{tpu_custom_call.1} parent=1 // pred_fallthru
      _
    %v75 = vld [vmem:[#allocation3] sm:$0xff]
    %v76 = vld [vmem:[#allocation3 + $0x8] sm:$0xff]
    %v77 = vld [vmem:[#allocation3 + $0x10] sm:$0xff]
    %v78 = vld [vmem:[#allocation3 + $0x18] sm:$0xff]
    %v79 = vld [vmem:[#allocation3 + $0x20] sm:$0xff]
    %v80 = vld [vmem:[#allocation3 + $0x28] sm:$0xff]
    %v81 = vld [vmem:[#allocation3 + $0x30] sm:$0xff]
    %v82 = vld [vmem:[#allocation3 + $0x38] sm:$0xff]
    %v83 = vld [vmem:[#allocation3 + $0x40] sm:$0xff]
    %v84 = vld [vmem:[#allocation3 + $0x48] sm:$0xff]
    %v85 = vld [vmem:[#allocation3 + $0x50] sm:$0xff]
    %v86 = vld [vmem:[#allocation3 + $0x58] sm:$0xff]
    %v87 = vld [vmem:[#allocation3 + $0x60] sm:$0xff]
    %v88 = vld [vmem:[#allocation3 + $0x68] sm:$0xff]
    %v89 = vld [vmem:[#allocation3 + $0x70] sm:$0xff]
    %v90 = vld [vmem:[#allocation3 + $0x78] sm:$0xff]
    %v91 = vld [vmem:[#allocation6] sm:$0xff]
    %v92 = vld [vmem:[#allocation6 + $0x8] sm:$0xff]
    %v93 = vld [vmem:[#allocation6 + $0x10] sm:$0xff]
    %v94 = vld [vmem:[#allocation6 + $0x18] sm:$0xff]
    %v95 = vld [vmem:[#allocation6 + $0x20] sm:$0xff]
    %v96 = vld [vmem:[#allocation6 + $0x28] sm:$0xff]
    %v97 = vld [vmem:[#allocation6 + $0x30] sm:$0xff]
    %v98 = vld [vmem:[#allocation6 + $0x38] sm:$0xff]
    %v99 = vld [vmem:[#allocation6 + $0x40] sm:$0xff]
    %v100 = vld [vmem:[#allocation6 + $0x48] sm:$0xff]
    %v101 = vld [vmem:[#allocation6 + $0x50] sm:$0xff]
    %v102 = vld [vmem:[#allocation6 + $0x58] sm:$0xff]
    %v103 = vld [vmem:[#allocation6 + $0x60] sm:$0xff]
    %v104 = vld [vmem:[#allocation6 + $0x68] sm:$0xff]
    %v105 = vld [vmem:[#allocation6 + $0x70] sm:$0xff]
    %v106 = vld [vmem:[#allocation6 + $0x78] sm:$0xff]
    %v107 = vld [vmem:[#allocation8] sm:$0xff]
    %v108 = vld [vmem:[#allocation8 + $0x8] sm:$0xff]
    %v109 = vld [vmem:[#allocation8 + $0x10] sm:$0xff]
    %v110 = vld [vmem:[#allocation8 + $0x18] sm:$0xff]
    %v111 = vld [vmem:[#allocation8 + $0x20] sm:$0xff]
    %v112 = vld [vmem:[#allocation8 + $0x28] sm:$0xff]
    %v113 = vld [vmem:[#allocation8 + $0x30] sm:$0xff]
    %v114 = vld [vmem:[#allocation8 + $0x38] sm:$0xff]
    %v115 = vld [vmem:[#allocation8 + $0x40] sm:$0xff]
    %v116 = vld [vmem:[#allocation8 + $0x48] sm:$0xff]
    %v117 = vld [vmem:[#allocation8 + $0x50] sm:$0xff]
    %v118 = vld [vmem:[#allocation8 + $0x58] sm:$0xff]
    %v119 = vld [vmem:[#allocation8 + $0x60] sm:$0xff]
    %v120 = vld [vmem:[#allocation8 + $0x68] sm:$0xff]
    %v121 = vld [vmem:[#allocation8 + $0x70] sm:$0xff]
    %v122 = vld [vmem:[#allocation8 + $0x78] sm:$0xff]
    %v123 = vld [vmem:[%s2] sm:$0x1]
    %v125 = vperm.slane %v123, 0
    %127 = vmatpush.msra.mxu0 %v106
    %128 = vmatpush.msra.mxu0 %v105
    %129 = vmatpush.msra.mxu0 %v104
    %130 = vmatpush.msra.mxu0 %v103
    %131 = vmatpush.msra.mxu0 %v102
    %132 = vmatpush.msra.mxu0 %v101
    %133 = vmatpush.msra.mxu0 %v100
    %134 = vmatpush.msra.mxu0 %v99
    %135 = vmatpush.msra.mxu0 %v98
    %136 = vmatpush.msra.mxu0 %v97
    %137 = vmatpush.msra.mxu0 %v96
    %138 = vmatpush.msra.mxu0 %v95
    %139 = vmatpush.msra.mxu0 %v94
    %140 = vmatpush.msra.mxu0 %v93
    %141 = vmatpush.msra.mxu0 %v92
    %142 = vmatpush.msra.mxu0 %v91
    %143 = vmatmul.f32.gmra.mxu0 %v75
    %v144 = vpop.f32.mrf.mxu0
    %v145 = vadd.f32 %v125, %v144
    %146 = vmatmul.f32.gmra.mxu0 %v76
    %v147 = vpop.f32.mrf.mxu0
    %v148 = vadd.f32 %v125, %v147
    %149 = vmatmul.f32.gmra.mxu0 %v77
    %v150 = vpop.f32.mrf.mxu0
    %v151 = vadd.f32 %v125, %v150
    %152 = vmatmul.f32.gmra.mxu0 %v78
    %v153 = vpop.f32.mrf.mxu0
    %v154 = vadd.f32 %v125, %v153
    %155 = vmatmul.f32.gmra.mxu0 %v79
    %v156 = vpop.f32.mrf.mxu0
    %v157 = vadd.f32 %v125, %v156
    %158 = vmatmul.f32.gmra.mxu0 %v80
    %v159 = vpop.f32.mrf.mxu0
    %v160 = vadd.f32 %v125, %v159
    %161 = vmatmul.f32.gmra.mxu0 %v81
    %v162 = vpop.f32.mrf.mxu0
    %v163 = vadd.f32 %v125, %v162
    %164 = vmatmul.f32.gmra.mxu0 %v82
    %v165 = vpop.f32.mrf.mxu0
    %v166 = vadd.f32 %v125, %v165
    %167 = vmatmul.f32.gmra.mxu0 %v83
    %v168 = vpop.f32.mrf.mxu0
    %v169 = vadd.f32 %v125, %v168
    %170 = vmatmul.f32.gmra.mxu0 %v84
    %v171 = vpop.f32.mrf.mxu0
    %v172 = vadd.f32 %v125, %v171
    %173 = vmatmul.f32.gmra.mxu0 %v85
    %v174 = vpop.f32.mrf.mxu0
    %v175 = vadd.f32 %v125, %v174
    %176 = vmatmul.f32.gmra.mxu0 %v86
    %v177 = vpop.f32.mrf.mxu0
    %v178 = vadd.f32 %v125, %v177
    %179 = vmatmul.f32.gmra.mxu0 %v87
    %v180 = vpop.f32.mrf.mxu0
    %v181 = vadd.f32 %v125, %v180
    %182 = vmatmul.f32.gmra.mxu0 %v88
    %v183 = vpop.f32.mrf.mxu0
    %v184 = vadd.f32 %v125, %v183
    %185 = vmatmul.f32.gmra.mxu0 %v89
    %v186 = vpop.f32.mrf.mxu0
    %v187 = vadd.f32 %v125, %v186
    %188 = vmatmul.f32.gmra.mxu0 %v90
    %v189 = vpop.f32.mrf.mxu0
    %v190 = vadd.f32 %v125, %v189
    %191 = vdwg.mxu0
    %v192 = vmax.f32 %v145, 0.0
    %v193 = vmax.f32 %v148, 0.0
    %v194 = vmax.f32 %v151, 0.0
    %v195 = vmax.f32 %v154, 0.0
    %v196 = vmax.f32 %v157, 0.0
    %v197 = vmax.f32 %v160, 0.0
    %v198 = vmax.f32 %v163, 0.0
    %v199 = vmax.f32 %v166, 0.0
    %v200 = vmax.f32 %v169, 0.0
    %v201 = vmax.f32 %v172, 0.0
    %v202 = vmax.f32 %v175, 0.0
    %v203 = vmax.f32 %v178, 0.0
    %v204 = vmax.f32 %v181, 0.0
    %v205 = vmax.f32 %v184, 0.0
    %v206 = vmax.f32 %v187, 0.0
    %v207 = vmax.f32 %v190, 0.0
    %v208 = vld [vmem:[%s4] sm:$0x1]
    %v210 = vperm.slane %v208, 0
    %212 = vmatpush.msra.mxu0 %v122
    %213 = vmatpush.msra.mxu0 %v121
    %214 = vmatpush.msra.mxu0 %v120
    %215 = vmatpush.msra.mxu0 %v119
    %216 = vmatpush.msra.mxu0 %v118
    %217 = vmatpush.msra.mxu0 %v117
    %218 = vmatpush.msra.mxu0 %v116
    %219 = vmatpush.msra.mxu0 %v115
    %220 = vmatpush.msra.mxu0 %v114
    %221 = vmatpush.msra.mxu0 %v113
    %222 = vmatpush.msra.mxu0 %v112
    %223 = vmatpush.msra.mxu0 %v111
    %224 = vmatpush.msra.mxu0 %v110
    %225 = vmatpush.msra.mxu0 %v109
    %226 = vmatpush.msra.mxu0 %v108
    %227 = vmatpush.msra.mxu0 %v107
    %228 = vmatmul.f32.gmra.mxu0 %v192
    %v229 = vpop.f32.mrf.mxu0
    %v230 = vadd.f32 %v210, %v229
    %231 = vmatmul.f32.gmra.mxu0 %v193
    %v232 = vpop.f32.mrf.mxu0
    %v233 = vadd.f32 %v210, %v232
    %234 = vmatmul.f32.gmra.mxu0 %v194
    %v235 = vpop.f32.mrf.mxu0
    %v236 = vadd.f32 %v210, %v235
    %237 = vmatmul.f32.gmra.mxu0 %v195
    %v238 = vpop.f32.mrf.mxu0
    %v239 = vadd.f32 %v210, %v238
    %240 = vmatmul.f32.gmra.mxu0 %v196
    %v241 = vpop.f32.mrf.mxu0
    %v242 = vadd.f32 %v210, %v241
    %243 = vmatmul.f32.gmra.mxu0 %v197
    %v244 = vpop.f32.mrf.mxu0
    %v245 = vadd.f32 %v210, %v244
    %246 = vmatmul.f32.gmra.mxu0 %v198
    %v247 = vpop.f32.mrf.mxu0
    %v248 = vadd.f32 %v210, %v247
    %249 = vmatmul.f32.gmra.mxu0 %v199
    %v250 = vpop.f32.mrf.mxu0
    %v251 = vadd.f32 %v210, %v250
    %252 = vmatmul.f32.gmra.mxu0 %v200
    %v253 = vpop.f32.mrf.mxu0
    %v254 = vadd.f32 %v210, %v253
    %255 = vmatmul.f32.gmra.mxu0 %v201
    %v256 = vpop.f32.mrf.mxu0
    %v257 = vadd.f32 %v210, %v256
    %258 = vmatmul.f32.gmra.mxu0 %v202
    %v259 = vpop.f32.mrf.mxu0
    %v260 = vadd.f32 %v210, %v259
    %261 = vmatmul.f32.gmra.mxu0 %v203
    %v262 = vpop.f32.mrf.mxu0
    %v263 = vadd.f32 %v210, %v262
    %264 = vmatmul.f32.gmra.mxu0 %v204
    %v265 = vpop.f32.mrf.mxu0
    %v266 = vadd.f32 %v210, %v265
    %267 = vmatmul.f32.gmra.mxu0 %v205
    %v268 = vpop.f32.mrf.mxu0
    %v269 = vadd.f32 %v210, %v268
    %270 = vmatmul.f32.gmra.mxu0 %v206
    %v271 = vpop.f32.mrf.mxu0
    %v272 = vadd.f32 %v210, %v271
    %273 = vmatmul.f32.gmra.mxu0 %v207
    %v274 = vpop.f32.mrf.mxu0
    %v275 = vadd.f32 %v210, %v274
    %276 = vdwg.mxu0
    %v277 = vmax.f32 %v230, 0.0
    %v278 = vmax.f32 %v233, 0.0
    %v279 = vmax.f32 %v236, 0.0
    %v280 = vmax.f32 %v239, 0.0
    %v281 = vmax.f32 %v242, 0.0
    %v282 = vmax.f32 %v245, 0.0
    %v283 = vmax.f32 %v248, 0.0
    %v284 = vmax.f32 %v251, 0.0
    %v285 = vmax.f32 %v254, 0.0
    %v286 = vmax.f32 %v257, 0.0
    %v287 = vmax.f32 %v260, 0.0
    %v288 = vmax.f32 %v263, 0.0
    %v289 = vmax.f32 %v266, 0.0
    %v290 = vmax.f32 %v269, 0.0
    %v291 = vmax.f32 %v272, 0.0
    %v292 = vmax.f32 %v275, 0.0
    %v293 = vld [vmem:[%s5] sm:$0x1]
    %v295 = vperm.slane %v293, 0
    %v297 = vmul.f32 %v277, %v295
    %v298 = vmul.f32 %v278, %v295
    %v299 = vmul.f32 %v279, %v295
    %v300 = vmul.f32 %v280, %v295
    %v301 = vmul.f32 %v281, %v295
    %v302 = vmul.f32 %v282, %v295
    %v303 = vmul.f32 %v283, %v295
    %v304 = vmul.f32 %v284, %v295
    %v305 = vmul.f32 %v285, %v295
    %v306 = vmul.f32 %v286, %v295
    %v307 = vmul.f32 %v287, %v295
    %v308 = vmul.f32 %v288, %v295
    %v309 = vmul.f32 %v289, %v295
    %v310 = vmul.f32 %v290, %v295
    %v311 = vmul.f32 %v291, %v295
    %v312 = vmul.f32 %v292, %v295
    %313 = vadd.xlane.f32.xlu0 %v297
    %v314 = vpop.xlane.xlu0 %313
    %315 = vadd.xlane.f32.xlu0 %v298
    %v316 = vpop.xlane.xlu0 %315
    %317 = vadd.xlane.f32.xlu0 %v299
    %v318 = vpop.xlane.xlu0 %317
    %319 = vadd.xlane.f32.xlu0 %v300
    %v320 = vpop.xlane.xlu0 %319
    %321 = vadd.xlane.f32.xlu0 %v301
    %v322 = vpop.xlane.xlu0 %321
    %323 = vadd.xlane.f32.xlu0 %v302
    %v324 = vpop.xlane.xlu0 %323
    %325 = vadd.xlane.f32.xlu0 %v303
    %v326 = vpop.xlane.xlu0 %325
    %327 = vadd.xlane.f32.xlu0 %v304
    %v328 = vpop.xlane.xlu0 %327
    %329 = vadd.xlane.f32.xlu0 %v305
    %v330 = vpop.xlane.xlu0 %329
    %331 = vadd.xlane.f32.xlu0 %v306
    %v332 = vpop.xlane.xlu0 %331
    %333 = vadd.xlane.f32.xlu0 %v307
    %v334 = vpop.xlane.xlu0 %333
    %335 = vadd.xlane.f32.xlu0 %v308
    %v336 = vpop.xlane.xlu0 %335
    %337 = vadd.xlane.f32.xlu0 %v309
    %v338 = vpop.xlane.xlu0 %337
    %339 = vadd.xlane.f32.xlu0 %v310
    %v340 = vpop.xlane.xlu0 %339
    %341 = vadd.xlane.f32.xlu0 %v311
    %v342 = vpop.xlane.xlu0 %341
    %343 = vadd.xlane.f32.xlu0 %v312
    %v344 = vpop.xlane.xlu0 %343
    %s345 = sld [smem:[#allocation2]]
    %v346 = vstv %s345
    %v347 = vadd.f32 %v314, %v346
    %v348 = vadd.f32 %v316, %v346
    %v349 = vadd.f32 %v318, %v346
    %v350 = vadd.f32 %v320, %v346
    %v351 = vadd.f32 %v322, %v346
    %v352 = vadd.f32 %v324, %v346
    %v353 = vadd.f32 %v326, %v346
    %v354 = vadd.f32 %v328, %v346
    %v355 = vadd.f32 %v330, %v346
    %v356 = vadd.f32 %v332, %v346
    %v357 = vadd.f32 %v334, %v346
    %v358 = vadd.f32 %v336, %v346
    %v359 = vadd.f32 %v338, %v346
    %v360 = vadd.f32 %v340, %v346
    %v361 = vadd.f32 %v342, %v346
    %v362 = vadd.f32 %v344, %v346
    %v379 = vlaneseq
    %v380 = vand.u32 %v379, 127
    %v381 = vperm.slane %v347, %v380
    %v382 = vadd.s32 %v380, 4294967288
    %v383 = vperm.slane %v348, %v382
    %vm384 = vcmask 130112
    %v385 = vsel %vm384, %v383, %v381
    %v386 = vadd.s32 %v380, 4294967280
    %v387 = vperm.slane %v349, %v386
    %vm388 = vcmask 195712
    %v389 = vsel %vm388, %v387, %v385
    %v390 = vadd.s32 %v380, 4294967272
    %v391 = vperm.slane %v350, %v390
    %vm392 = vcmask 261312
    %v393 = vsel %vm392, %v391, %v389
    %v394 = vadd.s32 %v380, 4294967264
    %v395 = vperm.slane %v351, %v394
    %vm396 = vcmask 326912
    %v397 = vsel %vm396, %v395, %v393
    %v398 = vadd.s32 %v380, 4294967256
    %v399 = vperm.slane %v352, %v398
    %vm400 = vcmask 392512
    %v401 = vsel %vm400, %v399, %v397
    %v402 = vadd.s32 %v380, 4294967248
    %v403 = vperm.slane %v353, %v402
    %vm404 = vcmask 458112
    %v405 = vsel %vm404, %v403, %v401
    %v406 = vadd.s32 %v380, 4294967240
    %v407 = vperm.slane %v354, %v406
    %vm408 = vcmask 523712
    %v409 = vsel %vm408, %v407, %v405
    %v410 = vadd.s32 %v380, 4294967232
    %v411 = vperm.slane %v355, %v410
    %vm412 = vcmask 589312
    %v413 = vsel %vm412, %v411, %v409
    %v414 = vadd.s32 %v380, 4294967224
    %v415 = vperm.slane %v356, %v414
    %vm416 = vcmask 654912
    %v417 = vsel %vm416, %v415, %v413
    %v418 = vadd.s32 %v380, 4294967216
    %v419 = vperm.slane %v357, %v418
    %vm420 = vcmask 720512
    %v421 = vsel %vm420, %v419, %v417
    %v422 = vadd.s32 %v380, 4294967208
    %v423 = vperm.slane %v358, %v422
    %vm424 = vcmask 786112
    %v425 = vsel %vm424, %v423, %v421
    %v426 = vadd.s32 %v380, 4294967200
    %v427 = vperm.slane %v359, %v426
    %vm428 = vcmask 851712
    %v429 = vsel %vm428, %v427, %v425
    %v430 = vadd.s32 %v380, 4294967192
    %v431 = vperm.slane %v360, %v430
    %vm432 = vcmask 917312
    %v433 = vsel %vm432, %v431, %v429
    %v434 = vadd.s32 %v380, 4294967184
    %v435 = vperm.slane %v361, %v434
    %vm436 = vcmask 982912
    %v437 = vsel %vm436, %v435, %v433
    %v438 = vadd.s32 %v380, 4294967176
    %v439 = vperm.slane %v362, %v438
    %vm440 = vcmask 1048512
    %v441 = vsel %vm440, %v439, %v437
    %443 = vst [vmem:[#allocation9] sm:$0x1] %v441
    // Predicated region
    $region42: #{tpu_custom_call.1} parent=1 // pred_check
      _
    $region43: #{tpu_custom_call.1} parent=1 // pred_check_branch
      %445 = sbr.rel (0) target = $region45
    $region44: #{tpu_custom_call.1} parent=1 // pred_region
      %447 = vsyncadd [#allocation5], 0
      %s449 = sshll.u32 [#allocation9], 4
      %s450 = int_to_ptr.vmem [resolvable:$true] %s449
      %s451 = sshll.u32 %s7, 4
      %s452 = int_to_ptr.hbm [resolvable:$true] %s451
      %454 = dma.vmem_to_hbm [thread:$0]  %s450, 16, %s452, [#allocation5]
    $region45: #{tpu_custom_call.1} parent=1 // pred_fallthru
      _
    // Predicated region
    $region46: #{tpu_custom_call.1} parent=1 // pred_check
      _
    $region47: #{tpu_custom_call.1} parent=1 // pred_check_branch
      %456 = sbr.rel (0) target = $region49
    $region48: #{tpu_custom_call.1} parent=1 // pred_region
      %458 = dma.done [#allocation5], 16
    $region49: #{tpu_custom_call.1} parent=1 // pred_fallthru
      _
    %459 = vsyncpa [#allocation4], 1
    %460 = vsyncpa [#allocation7], 1
    %461 = vsyncpa [#allocation5], 1

</llo_original>
